<compile_context>
chip_gen: v5e
topology: v5e:2x2
jax: 0.10.0
libtpu: 0.0.40
codegen_flags: <defaults>
</compile_context>

<pallas_src>
import jax
import jax.numpy as jnp
from jax.experimental import pallas as pl
from jax.experimental.pallas import tpu as pltpu


_LANE = 128
_SUBLANE = 8
# Total VMEM budget for the double-buffered pipelined blocks (x + out [+ attn]).
_DEFAULT_BLOCK_BUDGET = 24 * 1024 * 1024
_MIN_VMEM_LIMIT = 32 * 1024 * 1024


def _round_up(v, m):
    return ((v + m - 1) // m) * m


def _sa_kernel(x_ref, w_ref, b_ref, o_ref, a_ref):
    # x_ref: (bn, C, T)   w_ref: (C, 1) f32   b_ref: (1, 1) f32
    # o_ref: (bn, C, T)   a_ref: (bn, 1, T) f32
    x = x_ref[...].astype(jnp.float32)                      # (bn, C, T)
    w = w_ref[...][None, :, :]                              # (1, C, 1)
    b = b_ref[...].reshape(1, 1, 1)                         # (1, 1, 1)
    # 1x1 conv over channels: per-channel scale then sublane reduce (f32 acc).
    logits = jnp.sum(x * w, axis=1, keepdims=True) + b      # (bn, 1, T)
    attn = jax.nn.sigmoid(logits)                           # (bn, 1, T)
    a_ref[...] = attn.astype(a_ref.dtype)
    # Gate the input block; attn broadcasts across the channel (sublane) axis.
    o_ref[...] = (x * attn).astype(o_ref.dtype)


def _sa_kernel_nomask(x_ref, w_ref, b_ref, o_ref):
    # Same as above but never materializes / writes the attention map.
    x = x_ref[...].astype(jnp.float32)
    w = w_ref[...][None, :, :]
    b = b_ref[...].reshape(1, 1, 1)
    logits = jnp.sum(x * w, axis=1, keepdims=True) + b
    attn = jax.nn.sigmoid(logits)
    o_ref[...] = (x * attn).astype(o_ref.dtype)


def sa_forward(x, w, b, *, return_mask=False,
               block_budget_bytes=_DEFAULT_BLOCK_BUDGET):
    """x: (N, C, H, W); w: (1, C, 1, 1) conv weight; b: (1,) conv bias.

    Returns x * sigmoid(conv1x1(x)).  With return_mask=True also returns the
    (N, 1, H, W) f32 attention map (== PyTorch's self.mask_).
    """
    n, c, hgt, wid = x.shape
    hw = hgt * wid
    itemsize = jnp.dtype(x.dtype).itemsize

    x_flat = x.reshape(n, c, hw)
    w_col = w.reshape(1, c).T.astype(jnp.float32)            # (C, 1)
    b_sc = b.reshape(1, 1).astype(jnp.float32)               # (1, 1)

    # Sublane/lane padding-aware accounting: blocks pad the second-to-last dim
    # to 8 sublanes and the last dim to 128 lanes in VMEM.
    c_pad = max(_round_up(c, _SUBLANE), _SUBLANE)
    hw_pad = _round_up(hw, _LANE)

    # VMEM bytes consumed per spatial lane by the pipelined blocks:
    # x block + out block (double-buffered), plus f32 attn block if requested.
    bytes_per_lane = 2 * (2 * c_pad * itemsize + (_SUBLANE * 4 if return_mask else 0))
    budget_lanes = max(_LANE, (block_budget_bytes // bytes_per_lane) // _LANE * _LANE)

    if hw_pad > budget_lanes:
        # Large spatial extent: lane-dense spatial tiles of ~budget size.
        # Non-divisible HW handled with a cdiv grid + masked partial last block.
        hw_tile = budget_lanes
        grid = (n, pl.cdiv(hw, hw_tile))
        x_spec = pl.BlockSpec((1, c, hw_tile), lambda i, s: (i, 0, s))
        w_spec = pl.BlockSpec((c, 1), lambda i, s: (0, 0))
        b_spec = pl.BlockSpec((1, 1), lambda i, s: (0, 0))
        o_spec = pl.BlockSpec((1, c, hw_tile), lambda i, s: (i, 0, s))
        a_spec = pl.BlockSpec((1, 1, hw_tile), lambda i, s: (i, 0, s))
        dim_sem = ("parallel", "parallel")
        footprint = bytes_per_lane * hw_tile
    else:
        # Small spatial extent: whole H*W fits in one block -> grow the block
        # along N instead (fully contiguous in HBM = ideal DMA).
        per_image_bytes = bytes_per_lane * hw_pad
        bn = max(1, block_budget_bytes // per_image_bytes)
        if n >= 2:
            bn = min(bn, pl.cdiv(n, 2))   # keep >= 2 blocks for v7x megacore
        bn = min(bn, n)
        grid = (pl.cdiv(n, bn),)
        x_spec = pl.BlockSpec((bn, c, hw), lambda i: (i, 0, 0))
        w_spec = pl.BlockSpec((c, 1), lambda i: (0, 0))
        b_spec = pl.BlockSpec((1, 1), lambda i: (0, 0))
        o_spec = pl.BlockSpec((bn, c, hw), lambda i: (i, 0, 0))
        a_spec = pl.BlockSpec((bn, 1, hw), lambda i: (i, 0, 0))
        dim_sem = ("parallel",)
        footprint = per_image_bytes * bn

    vmem_limit = int(max(_MIN_VMEM_LIMIT, footprint + 4 * 1024 * 1024))

    cparams = pltpu.CompilerParams(
        dimension_semantics=dim_sem,
        vmem_limit_bytes=vmem_limit,
    )
    cost = pl.CostEstimate(
        flops=3 * n * c * hw,
        transcendentals=n * hw,
        bytes_accessed=2 * n * c * hw * itemsize + (n * hw * 4 if return_mask else 0),
    )

    if return_mask:
        out, attn = pl.pallas_call(
            _sa_kernel,
            out_shape=(
                jax.ShapeDtypeStruct((n, c, hw), x.dtype),
                jax.ShapeDtypeStruct((n, 1, hw), jnp.float32),
            ),
            grid=grid,
            in_specs=[x_spec, w_spec, b_spec],
            out_specs=(o_spec, a_spec),
            compiler_params=cparams,
            cost_estimate=cost,
        )(x_flat, w_col, b_sc)
        return out.reshape(n, c, hgt, wid), attn.reshape(n, 1, hgt, wid)

    out = pl.pallas_call(
        _sa_kernel_nomask,
        out_shape=jax.ShapeDtypeStruct((n, c, hw), x.dtype),
        grid=grid,
        in_specs=[x_spec, w_spec, b_spec],
        out_specs=o_spec,
        compiler_params=cparams,
        cost_estimate=cost,
    )(x_flat, w_col, b_sc)
    return out.reshape(n, c, hgt, wid)


def _reference(x, w, b):
    # Pure-JAX replica of the PyTorch forward (f32 math).
    n, c, hgt, wid = x.shape
    logits = jnp.einsum(
        "nchw,c->nhw", x.astype(jnp.float32), w.reshape(c).astype(jnp.float32)
    ) + b.astype(jnp.float32).reshape(1, 1, 1)
    attn = jax.nn.sigmoid(logits)[:, None, :, :]              # (N, 1, H, W) f32
    out = (x.astype(jnp.float32) * attn).astype(x.dtype)
    return out, attn


if __name__ == "__main__":
    key = jax.random.PRNGKey(0)

    def run_case(case_id, n, c, hgt, wid, return_mask, **kw):
        kx, kw_, kb = jax.random.split(jax.random.fold_in(key, case_id), 3)
        x = jax.random.normal(kx, (n, c, hgt, wid), dtype=jnp.float32)
        w = 0.1 * jax.random.normal(kw_, (1, c, 1, 1), dtype=jnp.float32)
        b = 0.1 * jax.random.normal(kb, (1,), dtype=jnp.float32)

        ref_out, ref_attn = _reference(x, w, b)

        if return_mask:
            out, mask = sa_forward(x, w, b, return_mask=True, **kw)
            out = jax.block_until_ready(out)
            assert mask.shape == (n, 1, hgt, wid), mask.shape
            assert jnp.allclose(mask, ref_attn, atol=1e-5, rtol=1e-5), "attn mismatch"
        else:
            out = sa_forward(x, w, b, return_mask=False, **kw)
            out = jax.block_until_ready(out)
        assert out.shape == (n, c, hgt, wid), out.shape
        assert jnp.allclose(out, ref_out, atol=1e-5, rtol=1e-5), "output mismatch"

    # Default (batch-blocked) path, with and without the attention-map output.
    run_case(0, 2, 4, 16, 16, True)
    run_case(1, 2, 4, 16, 16, False)
    # Spatial-tiled path with a partial (masked) last block, forced at small
    # shapes via a tiny block budget so both code paths are exercised.
    run_case(2, 2, 8, 16, 24, True, block_budget_bytes=48 * 1024)
    run_case(3, 2, 8, 16, 24, False, block_budget_bytes=32 * 1024)

    # TODO(synk): PyTorch's `self.mask_` is a stateful attribute; here the detached
    # attention map is exposed as an optional second output (return_mask=True).

    print("KERNEL_OK")
</pallas_src>

<mosaic_0001>
module attributes {stable_mosaic.version = 11 : i64} {
  func.func @_sa_kernel(%arg0: i32, %arg1: memref<1x4x256xf32, #tpu.memory_space<vmem>>, %arg2: memref<4x1xf32, #tpu.memory_space<vmem>>, %arg3: memref<1x1xf32, #tpu.memory_space<vmem>>, %arg4: memref<1x4x256xf32, #tpu.memory_space<vmem>>, %arg5: memref<1x1x256xf32, #tpu.memory_space<vmem>>) attributes {dimension_semantics = [#tpu.dimension_semantics<parallel>], iteration_bounds = array<i64: 2>, scalar_prefetch = 0 : i64, scratch_operands = 0 : i64, tpu.core_type = #tpu.core_type<tc>, window_params = [{transform_indices = @transform_0, window_bounds = array<i64: 1, 4, 256>}, {pipeline_mode = #tpu.pipeline_mode<synchronous>, transform_indices = @transform_1, window_bounds = array<i64: 4, 1>}, {pipeline_mode = #tpu.pipeline_mode<synchronous>, transform_indices = @transform_2, window_bounds = array<i64: 1, 1>}, {transform_indices = @transform_3, window_bounds = array<i64: 1, 4, 256>}, {transform_indices = @transform_4, window_bounds = array<i64: 1, 1, 256>}]} {
    %c0 = arith.constant 0 : index
    %c0_0 = arith.constant 0 : index
    %c0_1 = arith.constant 0 : index
    %0 = vector.load %arg1[%c0, %c0_0, %c0_1] : memref<1x4x256xf32, #tpu.memory_space<vmem>>, vector<1x4x256xf32>
    %c0_2 = arith.constant 0 : index
    %c0_3 = arith.constant 0 : index
    %1 = vector.load %arg2[%c0_2, %c0_3] : memref<4x1xf32, #tpu.memory_space<vmem>>, vector<4x1xf32>
    %2 = vector.shape_cast %1 : vector<4x1xf32> to vector<1x4x1xf32>
    %c0_4 = arith.constant 0 : index
    %c0_5 = arith.constant 0 : index
    %3 = vector.load %arg3[%c0_4, %c0_5] : memref<1x1xf32, #tpu.memory_space<vmem>>, vector<1x1xf32>
    %4 = vector.shape_cast %3 : vector<1x1xf32> to vector<1x1x1xf32>
    %5 = vector.broadcast %2 : vector<1x4x1xf32> to vector<1x4x256xf32>
    %6 = arith.mulf %0, %5 : vector<1x4x256xf32>
    %cst = arith.constant dense<0.000000e+00> : vector<1x256xf32>
    %7 = vector.multi_reduction <add>, %6, %cst [1] : vector<1x4x256xf32> to vector<1x256xf32>
    %8 = vector.shape_cast %7 : vector<1x256xf32> to vector<1x1x256xf32>
    %9 = vector.broadcast %4 : vector<1x1x1xf32> to vector<1x1x256xf32>
    %10 = arith.addf %8, %9 : vector<1x1x256xf32>
    %11 = arith.negf %10 : vector<1x1x256xf32>
    %12 = math.exp %11 : vector<1x1x256xf32>
    %cst_6 = arith.constant 1.000000e+00 : f32
    %13 = vector.broadcast %cst_6 : f32 to vector<1x1x256xf32>
    %14 = arith.addf %13, %12 : vector<1x1x256xf32>
    %15 = arith.divf %13, %14 : vector<1x1x256xf32>
    %c0_7 = arith.constant 0 : index
    %c0_8 = arith.constant 0 : index
    %c0_9 = arith.constant 0 : index
    %16 = vector.load %arg5[%c0_7, %c0_8, %c0_9] : memref<1x1x256xf32, #tpu.memory_space<vmem>>, vector<1x1x256xf32>
    tpu.vector_store %arg5[%c0_7, %c0_8, %c0_9], %15 {strides = array<i32>} : memref<1x1x256xf32, #tpu.memory_space<vmem>>, vector<1x1x256xf32>,
    %17 = vector.broadcast %15 : vector<1x1x256xf32> to vector<1x4x256xf32>
    %18 = arith.mulf %0, %17 : vector<1x4x256xf32>
    %c0_10 = arith.constant 0 : index
    %c0_11 = arith.constant 0 : index
    %c0_12 = arith.constant 0 : index
    %19 = vector.load %arg4[%c0_10, %c0_11, %c0_12] : memref<1x4x256xf32, #tpu.memory_space<vmem>>, vector<1x4x256xf32>
    tpu.vector_store %arg4[%c0_10, %c0_11, %c0_12], %18 {strides = array<i32>} : memref<1x4x256xf32, #tpu.memory_space<vmem>>, vector<1x4x256xf32>,
    return
  }
  func.func @transform_0(%arg0: i32) -> (i32, i32, i32) {
    %c0_i32 = arith.constant 0 : i32
    %c0_i32_0 = arith.constant 0 : i32
    %c0_i32_1 = arith.constant 0 : i32
    return %arg0, %c0_i32, %c0_i32_0 : i32, i32, i32
  }
  func.func @transform_1(%arg0: i32) -> (i32, i32) {
    %c0_i32 = arith.constant 0 : i32
    %c0_i32_0 = arith.constant 0 : i32
    %c0_i32_1 = arith.constant 0 : i32
    return %c0_i32, %c0_i32_0 : i32, i32
  }
  func.func @transform_2(%arg0: i32) -> (i32, i32) {
    %c0_i32 = arith.constant 0 : i32
    %c0_i32_0 = arith.constant 0 : i32
    %c0_i32_1 = arith.constant 0 : i32
    return %c0_i32, %c0_i32_0 : i32, i32
  }
  func.func @transform_3(%arg0: i32) -> (i32, i32, i32) {
    %c0_i32 = arith.constant 0 : i32
    %c0_i32_0 = arith.constant 0 : i32
    %c0_i32_1 = arith.constant 0 : i32
    return %arg0, %c0_i32, %c0_i32_0 : i32, i32, i32
  }
  func.func @transform_4(%arg0: i32) -> (i32, i32, i32) {
    %c0_i32 = arith.constant 0 : i32
    %c0_i32_0 = arith.constant 0 : i32
    %c0_i32_1 = arith.constant 0 : i32
    return %arg0, %c0_i32, %c0_i32_0 : i32, i32, i32
  }
}

</mosaic_0001>

<llo_original>
// kernel: tpu_custom_call.1
$region0: #{tpu_custom_call.1}
  #allocation0 [shape = 'u32[]', space=smem, size = 0x4, offset = 0x4, fixed_abs, tag = 'smem constant byte address 0x4 - core index']
  #allocation1 [shape = 'u32[72,128]{1,0:T(1,128)}', space=vmem, size = 0x9000, scoped, tag = 'internal scratch']
  #allocation2 [shape = 'f32[1,1]{1,0:T(1,128)S(1)}', space=vmem, size = 0x200, scoped, tag = 'scoped memory for tpu_custom_call.1']
  %s0 = inlined_call_operand.hbm [shape: f32[2,4,256], index: 0, kind: input, shape index: {}]
  %s1 = inlined_call_operand.vmem [shape: f32[4,1], index: 1, kind: input, shape index: {}]
  %s2 = inlined_call_operand.<no memory space> [shape: f32[1,1], index: 2, kind: input, shape index: {}]
  %s3 = inlined_call_operand.hbm [shape: f32[2,4,256], index: 3, kind: output, shape index: {0}]
  %s4 = inlined_call_operand.hbm [shape: f32[2,1,256], index: 4, kind: output, shape index: {1}]
  %5 = xla_tuple %s3, %s4
  %s6 = sld [smem:[#allocation0]]
  $region57: #{tpu_custom_call.1} parent=0
    _
  %s8 = ssub.s32 1, %s6
  %s9 = scalar_select 0, %s8, %s6
  %v10 = vstv %s2
  %11 = vst [vmem:[#allocation2] sm:$0x1] %v10
  $region1: #{tpu_custom_call.1} parent=0
    #allocation3 [shape = 'u8[8192]{0}', space=vmem, size = 0x2000, scoped, tag = 'input window, operand 0']
    #allocation4 [shape = 's32[2]{0}', space=sflag, size = 0x8, scoped, tag = 'scoped memory for tpu_custom_call.1']
    #allocation5 [shape = 's32[2]{0}', space=sflag, size = 0x8, scoped, tag = 'scoped memory for tpu_custom_call.1']
    #allocation6 [shape = 'u8[8192]{0}', space=vmem, size = 0x2000, scoped, tag = 'output window, operand 0']
    #allocation7 [shape = 'u8[2048]{0}', space=vmem, size = 0x800, scoped, tag = 'output window, operand 1']
    #allocation8 [shape = 's32[2]{0}', space=sflag, size = 0x8, scoped, tag = 'scoped memory for tpu_custom_call.1']
    %12 = vsyncpa [#allocation4], 0
    %s13 = scalar_lea.sflag [#allocation4], 1
    %14 = vsyncpa %s13, 0
    %15 = vsyncpa [#allocation5], 0
    %s16 = scalar_lea.sflag [#allocation5], 1
    %17 = vsyncpa %s16, 0
    %18 = vsyncpa [#allocation8], 0
    %s19 = scalar_lea.sflag [#allocation8], 1
    %20 = vsyncpa %s19, 0
    loop: start=0, step=1, limit=4
    $region2: #{tpu_custom_call.1} parent=1 // loop_pre_header
      _
    $region3: #{tpu_custom_call.1} parent=1 // loop_header
      %s22 = sphi 0, %s26
      %p23 = scmp.ge.s32.totalorder %s22, 4
      %s32 = sphi 0, %s34
      %s35 = sphi 0, %s32
      %s36 = sphi 0, %s35
      %s52 = sphi 0, %s36
      %s56 = sphi 0, %s56
      %s58 = sphi 0, %s56
      %s59 = sphi 0, %s58
      %s73 = sphi 0, %s59
      %s77 = sphi 0, %s77
      %s79 = sphi 0, %s77
      %s80 = sphi 0, %s79
      %s94 = sphi 0, %s80
      %s100 = sphi 0, %s102
      %s103 = sphi 0, %s100
      %s104 = sphi 0, %s103
      %s120 = sphi 0, %s104
      %s126 = sphi 0, %s128
      %s129 = sphi 0, %s126
      %s130 = sphi 0, %s129
      %s146 = sphi 0, %s130
    $region4: #{tpu_custom_call.1} parent=1 // loop_header_branch
      %25 = sbr.rel (%p23) target = $region8
    $region5: #{tpu_custom_call.1} parent=1 // loop_body
      %s27 = ssub.s32 %s22, 1
      %s28 = ssub.s32 %s22, 2
      %s29 = sadd.s32 %s22, 1
      %s30 = ssub.s32 %s22, %s29
      %p31 = scmp.eq.s32.totalorder %s30, 0
      %s33 = sadd.s32 %s32, 1
      %s34 = scalar_select %p31, %s32, %s33
      %p37 = pneg %p31
      %p38 = scmp.eq.s32.totalorder %s22, 1
      %p39 = por %p37, %p38
      %p40 = scmp.ne.s32.totalorder %s32, %s35
      %p41 = scmp.eq.s32.totalorder %s22, 0
      %p42 = por %p40, %p41
      %p43 = scmp.ne.s32.totalorder %s32, %s35
      %p44 = scmp.eq.s32.totalorder %s27, 1
      %p45 = por %p43, %p44
      %p46 = scmp.ne.s32.totalorder %s35, %s36
      %p47 = scmp.eq.s32.totalorder %s27, 0
      %p48 = por %p46, %p47
      %p49 = scmp.ne.s32.totalorder %s35, %s36
      %p50 = scmp.eq.s32.totalorder %s28, 1
      %p51 = por %p49, %p50
      %p53 = scmp.ne.s32.totalorder %s36, %s52
      %p54 = scmp.eq.s32.totalorder %s28, 0
      %p55 = por %p53, %p54
      %s57 = sadd.s32 %s56, 1
      %p60 = scmp.eq.s32.totalorder %s22, 1
      %p61 = scmp.ne.s32.totalorder %s56, %s58
      %p62 = scmp.eq.s32.totalorder %s22, 0
      %p63 = por %p61, %p62
      %p64 = scmp.ne.s32.totalorder %s56, %s58
      %p65 = scmp.eq.s32.totalorder %s27, 1
      %p66 = por %p64, %p65
      %p67 = scmp.ne.s32.totalorder %s58, %s59
      %p68 = scmp.eq.s32.totalorder %s27, 0
      %p69 = por %p67, %p68
      %p70 = scmp.ne.s32.totalorder %s58, %s59
      %p71 = scmp.eq.s32.totalorder %s28, 1
      %p72 = por %p70, %p71
      %p74 = scmp.ne.s32.totalorder %s59, %s73
      %p75 = scmp.eq.s32.totalorder %s28, 0
      %p76 = por %p74, %p75
      %s78 = sadd.s32 %s77, 1
      %p81 = scmp.eq.s32.totalorder %s22, 1
      %p82 = scmp.ne.s32.totalorder %s77, %s79
      %p83 = scmp.eq.s32.totalorder %s22, 0
      %p84 = por %p82, %p83
      %p85 = scmp.ne.s32.totalorder %s77, %s79
      %p86 = scmp.eq.s32.totalorder %s27, 1
      %p87 = por %p85, %p86
      %p88 = scmp.ne.s32.totalorder %s79, %s80
      %p89 = scmp.eq.s32.totalorder %s27, 0
      %p90 = por %p88, %p89
      %p91 = scmp.ne.s32.totalorder %s79, %s80
      %p92 = scmp.eq.s32.totalorder %s28, 1
      %p93 = por %p91, %p92
      %p95 = scmp.ne.s32.totalorder %s80, %s94
      %p96 = scmp.eq.s32.totalorder %s28, 0
      %p97 = por %p95, %p96
      %s98 = ssub.s32 %s22, %s29
      %p99 = scmp.eq.s32.totalorder %s98, 0
      %s101 = sadd.s32 %s100, 1
      %s102 = scalar_select %p99, %s100, %s101
      %p105 = pneg %p99
      %p106 = scmp.eq.s32.totalorder %s22, 1
      %p107 = por %p105, %p106
      %p108 = scmp.ne.s32.totalorder %s100, %s103
      %p109 = scmp.eq.s32.totalorder %s22, 0
      %p110 = por %p108, %p109
      %p111 = scmp.ne.s32.totalorder %s100, %s103
      %p112 = scmp.eq.s32.totalorder %s27, 1
      %p113 = por %p111, %p112
      %p114 = scmp.ne.s32.totalorder %s103, %s104
      %p115 = scmp.eq.s32.totalorder %s27, 0
      %p116 = por %p114, %p115
      %p117 = scmp.ne.s32.totalorder %s103, %s104
      %p118 = scmp.eq.s32.totalorder %s28, 1
      %p119 = por %p117, %p118
      %p121 = scmp.ne.s32.totalorder %s104, %s120
      %p122 = scmp.eq.s32.totalorder %s28, 0
      %p123 = por %p121, %p122
      %s124 = ssub.s32 %s22, %s29
      %p125 = scmp.eq.s32.totalorder %s124, 0
      %s127 = sadd.s32 %s126, 1
      %s128 = scalar_select %p125, %s126, %s127
      %p131 = pneg %p125
      %p132 = scmp.eq.s32.totalorder %s22, 1
      %p133 = por %p131, %p132
      %p134 = scmp.ne.s32.totalorder %s126, %s129
      %p135 = scmp.eq.s32.totalorder %s22, 0
      %p136 = por %p134, %p135
      %p137 = scmp.ne.s32.totalorder %s126, %s129
      %p138 = scmp.eq.s32.totalorder %s27, 1
      %p139 = por %p137, %p138
      %p140 = scmp.ne.s32.totalorder %s129, %s130
      %p141 = scmp.eq.s32.totalorder %s27, 0
      %p142 = por %p140, %p141
      %p143 = scmp.ne.s32.totalorder %s129, %s130
      %p144 = scmp.eq.s32.totalorder %s28, 1
      %p145 = por %p143, %p144
      %p147 = scmp.ne.s32.totalorder %s130, %s146
      %p148 = scmp.eq.s32.totalorder %s28, 0
      %p149 = por %p147, %p148
      %p150 = scmp.le.s32.totalorder 1, %s22
      %p151 = scmp.lt.s32.totalorder %s22, 3
      %p152 = pnand %p150, %p151
      %p153 = pneg %p152
      // Predicated region
      $region9: #{tpu_custom_call.1} parent=5 // pred_check
        _
      $region10: #{tpu_custom_call.1} parent=5 // pred_check_branch
        %155 = sbr.rel (%p152) target = $region12
      $region11: #{tpu_custom_call.1} parent=5 // pred_region
        %s156 = ssub.s32 %s22, 1
        // Predicated region
        $region13: #{tpu_custom_call.1} parent=11 // pred_check
          %p157 = pneg %p69
        $region14: #{tpu_custom_call.1} parent=11 // pred_check_branch
          %159 = sbr.rel (%p157) target = $region16
        $region15: #{tpu_custom_call.1} parent=11 // pred_region
          _
        $region16: #{tpu_custom_call.1} parent=11 // pred_fallthru
          _
        // Predicated region
        $region17: #{tpu_custom_call.1} parent=11 // pred_check
          %p160 = pneg %p90
        $region18: #{tpu_custom_call.1} parent=11 // pred_check_branch
          %162 = sbr.rel (%p160) target = $region20
        $region19: #{tpu_custom_call.1} parent=11 // pred_region
          _
        $region20: #{tpu_custom_call.1} parent=11 // pred_fallthru
          _
      $region12: #{tpu_custom_call.1} parent=5 // pred_fallthru
        _
      %p163 = scmp.lt.s32.totalorder %s22, 2
      // Predicated region
      $region21: #{tpu_custom_call.1} parent=5 // pred_check
        %p164 = pneg %p163
      $region22: #{tpu_custom_call.1} parent=5 // pred_check_branch
        %166 = sbr.rel (%p164) target = $region24
      $region23: #{tpu_custom_call.1} parent=5 // pred_region
        // Predicated region
        $region25: #{tpu_custom_call.1} parent=23 // pred_check
          %p167 = pneg %p42
        $region26: #{tpu_custom_call.1} parent=23 // pred_check_branch
          %169 = sbr.rel (%p167) target = $region28
        $region27: #{tpu_custom_call.1} parent=23 // pred_region
          %s170 = sand.u32 %s32, 1
          %s171 = scalar_lea.sflag [#allocation4], %s170
          %s172 = sand.u32 %s32, 1
          %s173 = smul.addr %s172, 8
          %s174 = scalar_lea.vmem [#allocation3], %s173
          %176 = vsyncadd %s171, 0
          %s177 = smul.addr %s22, 2
          %s178 = smul.addr %s177, 4
          %s179 = scalar_lea.hbm %s0, %s178
          %s181 = sshll.u32 %s179, 4
          %s182 = int_to_ptr.hbm [resolvable:$true] %s181
          %s183 = sshll.u32 %s174, 4
          %s184 = int_to_ptr.vmem [resolvable:$true] %s183
          %186 = dma.hbm_to_vmem [thread:$0]  %s182, 128, %s184, %s171
        $region28: #{tpu_custom_call.1} parent=23 // pred_fallthru
          _
      $region24: #{tpu_custom_call.1} parent=5 // pred_fallthru
        _
      %p187 = scmp.le.s32.totalorder 1, %s22
      %p188 = scmp.lt.s32.totalorder %s22, 3
      %p189 = pnand %p187, %p188
      %p190 = pneg %p189
      // Predicated region
      $region29: #{tpu_custom_call.1} parent=5 // pred_check
        _
      $region30: #{tpu_custom_call.1} parent=5 // pred_check_branch
        %192 = sbr.rel (%p189) target = $region32
      $region31: #{tpu_custom_call.1} parent=5 // pred_region
        %s193 = ssub.s32 %s22, 1
        %s194 = sand.u32 %s35, 1
        %s195 = scalar_lea.sflag [#allocation4], %s194
        %s196 = sand.u32 %s35, 1
        %s197 = smul.addr %s196, 8
        %s198 = scalar_lea.vmem [#allocation3], %s197
        // Predicated region
        $region33: #{tpu_custom_call.1} parent=31 // pred_check
          %p199 = pneg %p48
        $region34: #{tpu_custom_call.1} parent=31 // pred_check_branch
          %201 = sbr.rel (%p199) target = $region36
        $region35: #{tpu_custom_call.1} parent=31 // pred_region
          %203 = dma.done %s195, 128
        $region36: #{tpu_custom_call.1} parent=31 // pred_fallthru
          _
        %s204 = sand.u32 %s35, 1
        %s205 = scalar_lea.sflag [#allocation4], %s204
        %s206 = sand.u32 %s35, 1
        %s207 = smul.addr %s206, 8
        %s208 = scalar_lea.vmem [#allocation3], %s207
        %p209 = pneg %p48
        %p210 = pneg %p45
        %p211 = pneg %p69
        %p212 = pneg %p66
        %p213 = pneg %p90
        %p214 = pneg %p87
        %p215 = pneg %p116
        %p216 = pneg %p113
        %s217 = sand.u32 %s103, 1
        %s218 = scalar_lea.sflag [#allocation5], %s217
        %s219 = sand.u32 %s103, 1
        %s220 = smul.addr %s219, 8
        %s221 = scalar_lea.vmem [#allocation6], %s220
        %p222 = pneg %p142
        %p223 = pneg %p139
        %s224 = sand.u32 %s129, 1
        %s225 = scalar_lea.sflag [#allocation8], %s224
        %s226 = sand.u32 %s129, 1
        %s227 = smul.addr %s226, 2
        %s228 = scalar_lea.vmem [#allocation7], %s227
        %v229 = vld [vmem:[%s198] sm:$0xff]
        %v230 = vld [vmem:[%s1] sm:$0xf]
        %v231 = vld [vmem:[#allocation2] sm:$0x1]
        %233 = vset.pattern.permute.xlu0 0
        %234 = vperm.xlu0 %233, %v230
        %v235 = vpop.permute.xlu0 %234
        %v237 = vunpack.c.l.s4 839922192
        %v238 = vunpack.c.0.s8 %v237
        %v239 = vperm.slane %v235, %v238
        %v241 = vmul.f32 %v229, %v239
        %243 = vst [vmem:[#allocation1] ss:$2 sm:$0xff] %v241
        %v244 = vld.sshfl [vmem:[#allocation1] sm:$0xff pattern:$0x75316420]
        %v245 = vld.sshfl [vmem:[#allocation1 + $0x8] sm:$0xff pattern:$0x75316420]
        %vm248 = vcmask 1043456
        %v249 = vsel %vm248, %v244, 0.0
        %v250 = vrot.slane %v249, 4
        %v251 = vadd.f32 %v249, %v250
        %v252 = vrot.slane %v251, 2
        %v253 = vadd.f32 %v251, %v252
        %v254 = vrot.slane %v253, 1
        %v255 = vadd.f32 %v253, %v254
        %v256 = vsel %vm248, %v245, 0.0
        %v257 = vrot.slane %v256, 4
        %v258 = vadd.f32 %v256, %v257
        %v259 = vrot.slane %v258, 2
        %v260 = vadd.f32 %v258, %v259
        %v261 = vrot.slane %v260, 1
        %v262 = vadd.f32 %v260, %v261
        %264 = vset.pattern.permute.xlu0 0
        %265 = vperm.xlu0 %264, %v231
        %v266 = vpop.permute.xlu0 %265
        %v268 = vperm.slane %v266, 0
        %v269 = vadd.f32 %v255, %v268
        %v270 = vadd.f32 %v262, %v268
        %v271 = vxor.u32 %v269, 2147483648
        %v272 = vxor.u32 %v270, 2147483648
        %v273 = vmul.f32 %v271, 1.442695
        %v274 = vpow.pop %v273
        %v275 = vmul.f32 %v272, 1.442695
        %v276 = vpow.pop %v275
        %v277 = vadd.f32 %v274, 1.0
        %v278 = vadd.f32 %v276, 1.0
        %v279 = vrcp.pop %v277
        %v280 = vmul.f32 %v277, %v279
        %v281 = vsub.f32 1.0, %v280
        %v282 = vmul.f32 %v279, %v281
        %v283 = vadd.f32 %v279, %v282
        %vm284 = vweird.f32 %v277
        %vm285 = vweird.f32 %v279
        %vm286 = vmor %vm284, %vm285
        %v287 = vsel %vm286, %v279, %v283
        %v288 = vand.u32 2147483647, %v277
        %vm289 = vcmp.eq.f32.partialorder %v288, 8.507059e+37
        %v290 = vand.u32 %v277, 2147483648
        %v291 = vor.u32 1.1754944e-38, %v290
        %v292 = vsel %vm289, %v291, %v287
        %v293 = vmul.f32 1.0, %v292
        %v294 = vrcp.pop %v278
        %v295 = vmul.f32 %v278, %v294
        %v296 = vsub.f32 1.0, %v295
        %v297 = vmul.f32 %v294, %v296
        %v298 = vadd.f32 %v294, %v297
        %vm299 = vweird.f32 %v278
        %vm300 = vweird.f32 %v294
        %vm301 = vmor %vm299, %vm300
        %v302 = vsel %vm301, %v294, %v298
        %v303 = vand.u32 2147483647, %v278
        %vm304 = vcmp.eq.f32.partialorder %v303, 8.507059e+37
        %v305 = vand.u32 %v278, 2147483648
        %v306 = vor.u32 1.1754944e-38, %v305
        %v307 = vsel %vm304, %v306, %v302
        %v308 = vmul.f32 1.0, %v307
        %v311 = vrot.slane %v308, 7
        %vm312 = vcmask 1040384
        %v313 = vsel %vm312, %v293, %v311
        %v315 = vlaneseq
        %vm316 = vcmp.ge.s32.totalorder %v315, 0
        %vm317 = vcmp.lt.s32.totalorder %v315, 256
        %vm318 = vmand %vm316, %vm317
        %319 = vst.msk [vmem:[%s228] sm:$0x3] %vm318, %v313
        %v320 = vrot.slane %v308, 4
        %v321 = vsel %vm248, %v293, %v320
        %v323 = vmul.f32 %v229, %v321
        %324 = vst [vmem:[%s221] sm:$0xff] %v323
        %s325 = sand.u32 %s103, 1
        %s326 = scalar_lea.sflag [#allocation5], %s325
        %s327 = sand.u32 %s103, 1
        %s328 = smul.addr %s327, 8
        %s329 = scalar_lea.vmem [#allocation6], %s328
        %s330 = sand.u32 %s129, 1
        %s331 = scalar_lea.sflag [#allocation8], %s330
        %s332 = sand.u32 %s129, 1
        %s333 = smul.addr %s332, 2
        %s334 = scalar_lea.vmem [#allocation7], %s333
        // Predicated region
        $region37: #{tpu_custom_call.1} parent=31 // pred_check
          %p335 = pneg %p113
        $region38: #{tpu_custom_call.1} parent=31 // pred_check_branch
          %337 = sbr.rel (%p335) target = $region40
        $region39: #{tpu_custom_call.1} parent=31 // pred_region
          %339 = vsyncadd %s326, 0
          %s340 = smul.addr %s27, 2
          %s341 = smul.addr %s340, 4
          %s342 = scalar_lea.hbm %s3, %s341
          %s344 = sshll.u32 %s329, 4
          %s345 = int_to_ptr.vmem [resolvable:$true] %s344
          %s346 = sshll.u32 %s342, 4
          %s347 = int_to_ptr.hbm [resolvable:$true] %s346
          %349 = dma.vmem_to_hbm [thread:$0]  %s345, 128, %s347, %s326
        $region40: #{tpu_custom_call.1} parent=31 // pred_fallthru
          _
        // Predicated region
        $region41: #{tpu_custom_call.1} parent=31 // pred_check
          %p350 = pneg %p139
        $region42: #{tpu_custom_call.1} parent=31 // pred_check_branch
          %352 = sbr.rel (%p350) target = $region44
        $region43: #{tpu_custom_call.1} parent=31 // pred_region
          %354 = vsyncadd %s331, 0
          %s355 = smul.addr %s27, 2
          %s356 = scalar_lea.hbm %s4, %s355
          %s358 = sshll.u32 %s334, 4
          %s359 = int_to_ptr.vmem [resolvable:$true] %s358
          %s360 = sshll.u32 %s356, 4
          %s361 = int_to_ptr.hbm [resolvable:$true] %s360
          %363 = dma.vmem_to_hbm [thread:$0]  %s359, 32, %s361, %s331
        $region44: #{tpu_custom_call.1} parent=31 // pred_fallthru
          _
      $region32: #{tpu_custom_call.1} parent=5 // pred_fallthru
        _
      %p364 = scmp.le.s32.totalorder 2, %s22
      // Predicated region
      $region45: #{tpu_custom_call.1} parent=5 // pred_check
        %p365 = pneg %p364
      $region46: #{tpu_custom_call.1} parent=5 // pred_check_branch
        %367 = sbr.rel (%p365) target = $region48
      $region47: #{tpu_custom_call.1} parent=5 // pred_region
        %s368 = ssub.s32 %s22, 2
        // Predicated region
        $region49: #{tpu_custom_call.1} parent=47 // pred_check
          %p369 = pneg %p119
        $region50: #{tpu_custom_call.1} parent=47 // pred_check_branch
          %371 = sbr.rel (%p369) target = $region52
        $region51: #{tpu_custom_call.1} parent=47 // pred_region
          %s372 = sand.u32 %s104, 1
          %s373 = scalar_lea.sflag [#allocation5], %s372
          %s374 = sand.u32 %s104, 1
          %s375 = smul.addr %s374, 8
          %s376 = scalar_lea.vmem [#allocation6], %s375
          %378 = dma.done %s373, 128
        $region52: #{tpu_custom_call.1} parent=47 // pred_fallthru
          _
        // Predicated region
        $region53: #{tpu_custom_call.1} parent=47 // pred_check
          %p379 = pneg %p145
        $region54: #{tpu_custom_call.1} parent=47 // pred_check_branch
          %381 = sbr.rel (%p379) target = $region56
        $region55: #{tpu_custom_call.1} parent=47 // pred_region
          %s382 = sand.u32 %s130, 1
          %s383 = scalar_lea.sflag [#allocation8], %s382
          %s384 = sand.u32 %s130, 1
          %s385 = smul.addr %s384, 2
          %s386 = scalar_lea.vmem [#allocation7], %s385
          %388 = dma.done %s383, 32
        $region56: #{tpu_custom_call.1} parent=47 // pred_fallthru
          _
      $region48: #{tpu_custom_call.1} parent=5 // pred_fallthru
        _
    $region6: #{tpu_custom_call.1} parent=1 // loop_footer
      %s26 = sadd.s32 1, %s22
    $region7: #{tpu_custom_call.1} parent=1 // loop_footer_branch
      %21 = sbr.rel target = $region3
    $region8: #{tpu_custom_call.1} parent=1 // loop_exit
      _
    %389 = vsyncpa [#allocation4], 1
    %s390 = scalar_lea.sflag [#allocation4], 1
    %391 = vsyncpa %s390, 1
    %392 = vsyncpa [#allocation5], 1
    %s393 = scalar_lea.sflag [#allocation5], 1
    %394 = vsyncpa %s393, 1
    %395 = vsyncpa [#allocation8], 1
    %s396 = scalar_lea.sflag [#allocation8], 1
    %397 = vsyncpa %s396, 1

</llo_original>
